<compile_context>
chip_gen: v7x
topology: tpu7x:2x2x1
jax: 0.10.0
libtpu: 0.0.40
codegen_flags: <defaults>
</compile_context>

<pallas_src>
import jax
import jax.numpy as jnp
import numpy as np
from jax import lax
from jax.experimental import pallas as pl
from jax.experimental.pallas import tpu as pltpu

EPS = 1e-5


def _output_layer_kernel(x_ref, gamma_ref, beta_ref, w_ref, b_ref, o_ref, acc_ref):
    # x_ref:     (N, tile_C, HW) f32   activation block (one channel tile)
    # gamma_ref: (1, tile_C, 1)  f32   BatchNorm weight tile
    # beta_ref:  (1, tile_C, 1)  f32   BatchNorm bias tile
    # w_ref:     (tile_C, K)     f32   Linear weight tile (pre-transposed)
    # b_ref:     (1, K)          f32   Linear bias
    # o_ref:     (N, K)          f32   logits (written on the last grid step)
    # acc_ref:   (N, K)          f32   VMEM accumulator (persists across grid)
    c_step = pl.program_id(0)

    @pl.when(c_step == 0)
    def _init():
        acc_ref[...] = jnp.zeros_like(acc_ref)

    x = x_ref[...]
    n, tc, hw = x.shape
    inv_cnt = 1.0 / (n * hw)

    # --- One-pass train-mode batch statistics per channel (biased variance) ---
    s1 = jnp.sum(x, axis=(0, 2), keepdims=True)              # (1, tile_C, 1)
    s2 = jnp.sum(x * x, axis=(0, 2), keepdims=True)          # (1, tile_C, 1)
    mean = s1 * inv_cnt
    var = jnp.maximum(s2 * inv_cnt - mean * mean, 0.0)       # clamp fp round-off
    inv_std = lax.rsqrt(var + EPS)

    # Fold BN into per-channel scale/shift: y = a * x + b
    a = gamma_ref[...] * inv_std                              # (1, tile_C, 1)
    b = beta_ref[...] - mean * a                              # (1, tile_C, 1)

    # --- Normalize + ReLU (fused scale/shift + max), then mean-pool over HW ---
    y = jnp.maximum(x * a + b, 0.0)                           # (N, tile_C, HW)
    pooled = jnp.sum(y, axis=2) * (1.0 / hw)                  # (N, tile_C)

    # --- Partial FC contribution of this channel tile (no transpose needed) ---
    acc_ref[...] += jnp.dot(pooled, w_ref[...],
                            preferred_element_type=jnp.float32)

    @pl.when(c_step == pl.num_programs(0) - 1)
    def _finalize():
        o_ref[...] = acc_ref[...] + b_ref[...]


def _choose_tile_c(N, C, HW, K, budget_bytes):
    """Largest channel tile (multiple of 8 that divides C, or C itself) whose
    double-buffered blocks fit the VMEM budget."""
    def vmem_bytes(tc):
        x_blk = N * tc * HW * 4
        w_blk = tc * max(K, 128) * 4
        prm_blk = 2 * tc * 128 * 4            # (1, tc, 1) pads lanes to 128
        return 2 * (x_blk + w_blk + prm_blk)  # double-buffered pipeline
    if vmem_bytes(C) <= budget_bytes:
        return C
    start = (C // 8) * 8
    for tc in range(start, 7, -8):
        if C % tc == 0 and vmem_bytes(tc) <= budget_bytes:
            return tc
    return 8 if C % 8 == 0 else C


def output_layer_forward(x_nchw, bn_gamma, bn_beta, fc_weight, fc_bias,
                         *, tile_c=None, vmem_budget_bytes=20 * 1024 * 1024):
    """x_nchw: (N, C, H, W); fc_weight: (K, C); fc_bias: (K,). Returns (N, K)."""
    N, C, H, W = x_nchw.shape
    K = fc_weight.shape[0]
    HW = H * W

    # Free view of the activation (no HBM transpose).
    x = x_nchw.reshape(N, C, HW).astype(jnp.float32)
    gamma = bn_gamma.reshape(1, C, 1).astype(jnp.float32)
    beta = bn_beta.reshape(1, C, 1).astype(jnp.float32)
    w_t = jnp.transpose(fc_weight).astype(jnp.float32)        # (C, K), tiny
    b2 = fc_bias.reshape(1, K).astype(jnp.float32)

    if tile_c is None:
        tile_c = _choose_tile_c(N, C, HW, K, vmem_budget_bytes)
    if C % tile_c != 0:
        tile_c = C                                             # single-tile fallback
    num_c_tiles = C // tile_c

    # TODO(synk): on v7x a second (megacore-parallel) grid axis with per-core
    # partial accumulators could use both TensorCores; kept single-axis here.
    return pl.pallas_call(
        _output_layer_kernel,
        out_shape=jax.ShapeDtypeStruct((N, K), jnp.float32),
        grid=(num_c_tiles,),
        in_specs=[
            pl.BlockSpec((N, tile_c, HW), lambda c: (0, c, 0)),
            pl.BlockSpec((1, tile_c, 1), lambda c: (0, c, 0)),
            pl.BlockSpec((1, tile_c, 1), lambda c: (0, c, 0)),
            pl.BlockSpec((tile_c, K), lambda c: (c, 0)),
            pl.BlockSpec((1, K), lambda c: (0, 0)),
        ],
        out_specs=pl.BlockSpec((N, K), lambda c: (0, 0)),
        scratch_shapes=[pltpu.VMEM((N, K), jnp.float32)],
        compiler_params=pltpu.CompilerParams(
            # Channel axis carries the FC-reduction accumulator -> "arbitrary".
            dimension_semantics=("arbitrary",),
            vmem_limit_bytes=48 * 1024 * 1024,
        ),
    )(x, gamma, beta, w_t, b2)


def _reference_forward(x_nchw, bn_gamma, bn_beta, fc_weight, fc_bias):
    """Pure-JAX reference mirroring the PyTorch module (train-mode BN)."""
    mean = jnp.mean(x_nchw, axis=(0, 2, 3), keepdims=True)
    var = jnp.mean((x_nchw - mean) ** 2, axis=(0, 2, 3), keepdims=True)
    y = (x_nchw - mean) / jnp.sqrt(var + EPS)
    y = y * bn_gamma.reshape(1, -1, 1, 1) + bn_beta.reshape(1, -1, 1, 1)
    y = jnp.maximum(y, 0.0)
    pooled = jnp.mean(y, axis=(2, 3))                          # (N, C)
    return pooled @ fc_weight.T + fc_bias


if __name__ == "__main__":
    key = jax.random.PRNGKey(0)

    def make_inputs(k, N, C, H, W, K):
        kx, kg, kb, kw, kfb = jax.random.split(k, 5)
        x = jax.random.normal(kx, (N, C, H, W), dtype=jnp.float32)
        bn_gamma = 1.0 + 0.1 * jax.random.normal(kg, (C,), dtype=jnp.float32)
        bn_beta = 0.1 * jax.random.normal(kb, (C,), dtype=jnp.float32)
        bound = 1.0 / np.sqrt(C)
        fc_weight = jax.random.uniform(kw, (K, C), minval=-bound, maxval=bound,
                                       dtype=jnp.float32)
        fc_bias = jax.random.uniform(kfb, (K,), minval=-bound, maxval=bound,
                                     dtype=jnp.float32)
        return x, bn_gamma, bn_beta, fc_weight, fc_bias

    k1, k2 = jax.random.split(key)

    # Case 1: single channel tile (grid=(1,)). batch=2, filters=8, 16x16, 10 classes.
    args1 = make_inputs(k1, 2, 8, 16, 16, 10)
    out1 = jax.block_until_ready(output_layer_forward(*args1))
    ref1 = _reference_forward(*args1)
    assert out1.shape == (2, 10)
    assert np.allclose(np.asarray(out1), np.asarray(ref1), atol=1e-4, rtol=1e-4)

    # Case 2: force channel tiling (grid=(2,)) to exercise the accumulated-FC path.
    args2 = make_inputs(k2, 2, 16, 8, 8, 10)
    out2 = jax.block_until_ready(output_layer_forward(*args2, tile_c=8))
    ref2 = _reference_forward(*args2)
    assert out2.shape == (2, 10)
    assert np.allclose(np.asarray(out2), np.asarray(ref2), atol=1e-4, rtol=1e-4)

    print("KERNEL_OK")
</pallas_src>

<mosaic_0001>
module attributes {stable_mosaic.version = 11 : i64} {
  func.func @_output_layer_kernel(%arg0: i32, %arg1: memref<2x8x256xf32, #tpu.memory_space<vmem>>, %arg2: memref<1x8x1xf32, #tpu.memory_space<vmem>>, %arg3: memref<1x8x1xf32, #tpu.memory_space<vmem>>, %arg4: memref<8x10xf32, #tpu.memory_space<vmem>>, %arg5: memref<1x10xf32, #tpu.memory_space<vmem>>, %arg6: memref<2x10xf32, #tpu.memory_space<vmem>>, %arg7: memref<2x10xf32, #tpu.memory_space<vmem>>) attributes {dimension_semantics = [#tpu.dimension_semantics<arbitrary>], iteration_bounds = array<i64: 1>, scalar_prefetch = 0 : i64, scratch_operands = 1 : i64, tpu.core_type = #tpu.core_type<tc>, window_params = [{transform_indices = @transform_0, window_bounds = array<i64: 2, 8, 256>}, {transform_indices = @transform_1, window_bounds = array<i64: 1, 8, 1>}, {transform_indices = @transform_2, window_bounds = array<i64: 1, 8, 1>}, {transform_indices = @transform_3, window_bounds = array<i64: 8, 10>}, {pipeline_mode = #tpu.pipeline_mode<synchronous>, transform_indices = @transform_4, window_bounds = array<i64: 1, 10>}, {pipeline_mode = #tpu.pipeline_mode<synchronous>, transform_indices = @transform_5, window_bounds = array<i64: 2, 10>}]} {
    %c0_i32 = arith.constant 0 : i32
    %0 = arith.cmpi eq, %arg0, %c0_i32 : i32
    %1 = arith.extui %0 : i1 to i32
    %c0_i32_0 = arith.constant 0 : i32
    %2 = arith.cmpi ne, %1, %c0_i32_0 : i32
    scf.if %2 {
      %cst_26 = arith.constant 0.000000e+00 : f32
      %42 = vector.broadcast %cst_26 : f32 to vector<2x10xf32>
      %c0_27 = arith.constant 0 : index
      %c0_28 = arith.constant 0 : index
      %43 = vector.load %arg7[%c0_27, %c0_28] : memref<2x10xf32, #tpu.memory_space<vmem>>, vector<2x10xf32>
      tpu.vector_store %arg7[%c0_27, %c0_28], %42 {strides = array<i32>} : memref<2x10xf32, #tpu.memory_space<vmem>>, vector<2x10xf32>,
    } else {
    }
    %c0 = arith.constant 0 : index
    %c0_1 = arith.constant 0 : index
    %c0_2 = arith.constant 0 : index
    %3 = vector.load %arg1[%c0, %c0_1, %c0_2] : memref<2x8x256xf32, #tpu.memory_space<vmem>>, vector<2x8x256xf32>
    %cst = arith.constant dense<0.000000e+00> : vector<8xf32>
    %4 = vector.multi_reduction <add>, %3, %cst [0, 2] : vector<2x8x256xf32> to vector<8xf32>
    %5 = vector.shape_cast %4 : vector<8xf32> to vector<1x8x1xf32>
    %6 = arith.mulf %3, %3 : vector<2x8x256xf32>
    %cst_3 = arith.constant dense<0.000000e+00> : vector<8xf32>
    %7 = vector.multi_reduction <add>, %6, %cst_3 [0, 2] : vector<2x8x256xf32> to vector<8xf32>
    %8 = vector.shape_cast %7 : vector<8xf32> to vector<1x8x1xf32>
    %cst_4 = arith.constant 0.001953125 : f32
    %9 = vector.broadcast %cst_4 : f32 to vector<1x8x1xf32>
    %10 = arith.mulf %5, %9 : vector<1x8x1xf32>
    %cst_5 = arith.constant 0.001953125 : f32
    %11 = vector.broadcast %cst_5 : f32 to vector<1x8x1xf32>
    %12 = arith.mulf %8, %11 : vector<1x8x1xf32>
    %13 = arith.mulf %10, %10 : vector<1x8x1xf32>
    %14 = arith.subf %12, %13 : vector<1x8x1xf32>
    %cst_6 = arith.constant 0.000000e+00 : f32
    %15 = vector.broadcast %cst_6 : f32 to vector<1x8x1xf32>
    %16 = arith.maximumf %14, %15 : vector<1x8x1xf32>
    %cst_7 = arith.constant 9.99999974E-6 : f32
    %17 = vector.broadcast %cst_7 : f32 to vector<1x8x1xf32>
    %18 = arith.addf %16, %17 : vector<1x8x1xf32>
    %19 = math.rsqrt %18 : vector<1x8x1xf32>
    %c0_8 = arith.constant 0 : index
    %c0_9 = arith.constant 0 : index
    %c0_10 = arith.constant 0 : index
    %20 = vector.load %arg2[%c0_8, %c0_9, %c0_10] : memref<1x8x1xf32, #tpu.memory_space<vmem>>, vector<1x8x1xf32>
    %21 = arith.mulf %20, %19 : vector<1x8x1xf32>
    %c0_11 = arith.constant 0 : index
    %c0_12 = arith.constant 0 : index
    %c0_13 = arith.constant 0 : index
    %22 = vector.load %arg3[%c0_11, %c0_12, %c0_13] : memref<1x8x1xf32, #tpu.memory_space<vmem>>, vector<1x8x1xf32>
    %23 = arith.mulf %10, %21 : vector<1x8x1xf32>
    %24 = arith.subf %22, %23 : vector<1x8x1xf32>
    %25 = vector.broadcast %21 : vector<1x8x1xf32> to vector<2x8x256xf32>
    %26 = arith.mulf %3, %25 : vector<2x8x256xf32>
    %27 = vector.broadcast %24 : vector<1x8x1xf32> to vector<2x8x256xf32>
    %28 = arith.addf %26, %27 : vector<2x8x256xf32>
    %cst_14 = arith.constant 0.000000e+00 : f32
    %29 = vector.broadcast %cst_14 : f32 to vector<2x8x256xf32>
    %30 = arith.maximumf %28, %29 : vector<2x8x256xf32>
    %cst_15 = arith.constant dense<0.000000e+00> : vector<2x8xf32>
    %31 = vector.multi_reduction <add>, %30, %cst_15 [2] : vector<2x8x256xf32> to vector<2x8xf32>
    %cst_16 = arith.constant 3.906250e-03 : f32
    %32 = vector.broadcast %cst_16 : f32 to vector<2x8xf32>
    %33 = arith.mulf %31, %32 : vector<2x8xf32>
    %c0_17 = arith.constant 0 : index
    %c0_18 = arith.constant 0 : index
    %34 = vector.load %arg7[%c0_17, %c0_18] : memref<2x10xf32, #tpu.memory_space<vmem>>, vector<2x10xf32>
    %c0_19 = arith.constant 0 : index
    %c0_20 = arith.constant 0 : index
    %35 = vector.load %arg4[%c0_19, %c0_20] : memref<8x10xf32, #tpu.memory_space<vmem>>, vector<8x10xf32>
    %cst_21 = arith.constant dense<0.000000e+00> : vector<2x10xf32>
    %36 = tpu.matmul %33, %35, %cst_21 {dimension_numbers = #tpu.dot_dimension_numbers<[1], [0], [0], [1], [0, 0, 1, 1], [], []>} : vector<2x8xf32>, vector<8x10xf32>, vector<2x10xf32> -> vector<2x10xf32>
    %37 = arith.addf %34, %36 : vector<2x10xf32>
    %c0_22 = arith.constant 0 : index
    %c0_23 = arith.constant 0 : index
    %38 = vector.load %arg7[%c0_22, %c0_23] : memref<2x10xf32, #tpu.memory_space<vmem>>, vector<2x10xf32>
    tpu.vector_store %arg7[%c0_22, %c0_23], %37 {strides = array<i32>} : memref<2x10xf32, #tpu.memory_space<vmem>>, vector<2x10xf32>,
    %c0_i32_24 = arith.constant 0 : i32
    %39 = arith.cmpi eq, %arg0, %c0_i32_24 : i32
    %40 = arith.extui %39 : i1 to i32
    %c0_i32_25 = arith.constant 0 : i32
    %41 = arith.cmpi ne, %40, %c0_i32_25 : i32
    scf.if %41 {
      %c0_26 = arith.constant 0 : index
      %c0_27 = arith.constant 0 : index
      %42 = vector.load %arg7[%c0_26, %c0_27] : memref<2x10xf32, #tpu.memory_space<vmem>>, vector<2x10xf32>
      %c0_28 = arith.constant 0 : index
      %c0_29 = arith.constant 0 : index
      %43 = vector.load %arg5[%c0_28, %c0_29] : memref<1x10xf32, #tpu.memory_space<vmem>>, vector<1x10xf32>
      %44 = vector.broadcast %43 : vector<1x10xf32> to vector<2x10xf32>
      %45 = arith.addf %42, %44 : vector<2x10xf32>
      %c0_30 = arith.constant 0 : index
      %c0_31 = arith.constant 0 : index
      %46 = vector.load %arg6[%c0_30, %c0_31] : memref<2x10xf32, #tpu.memory_space<vmem>>, vector<2x10xf32>
      tpu.vector_store %arg6[%c0_30, %c0_31], %45 {strides = array<i32>} : memref<2x10xf32, #tpu.memory_space<vmem>>, vector<2x10xf32>,
    } else {
    }
    return
  }
  func.func @transform_0(%arg0: i32) -> (i32, i32, i32) {
    %c0_i32 = arith.constant 0 : i32
    %c0_i32_0 = arith.constant 0 : i32
    %c0_i32_1 = arith.constant 0 : i32
    return %c0_i32, %arg0, %c0_i32_0 : i32, i32, i32
  }
  func.func @transform_1(%arg0: i32) -> (i32, i32, i32) {
    %c0_i32 = arith.constant 0 : i32
    %c0_i32_0 = arith.constant 0 : i32
    %c0_i32_1 = arith.constant 0 : i32
    return %c0_i32, %arg0, %c0_i32_0 : i32, i32, i32
  }
  func.func @transform_2(%arg0: i32) -> (i32, i32, i32) {
    %c0_i32 = arith.constant 0 : i32
    %c0_i32_0 = arith.constant 0 : i32
    %c0_i32_1 = arith.constant 0 : i32
    return %c0_i32, %arg0, %c0_i32_0 : i32, i32, i32
  }
  func.func @transform_3(%arg0: i32) -> (i32, i32) {
    %c0_i32 = arith.constant 0 : i32
    %c0_i32_0 = arith.constant 0 : i32
    return %arg0, %c0_i32 : i32, i32
  }
  func.func @transform_4(%arg0: i32) -> (i32, i32) {
    %c0_i32 = arith.constant 0 : i32
    %c0_i32_0 = arith.constant 0 : i32
    %c0_i32_1 = arith.constant 0 : i32
    return %c0_i32, %c0_i32_0 : i32, i32
  }
  func.func @transform_5(%arg0: i32) -> (i32, i32) {
    %c0_i32 = arith.constant 0 : i32
    %c0_i32_0 = arith.constant 0 : i32
    %c0_i32_1 = arith.constant 0 : i32
    return %c0_i32, %c0_i32_0 : i32, i32
  }
}

</mosaic_0001>

<llo_original>
// kernel: tpu_custom_call.1
$region0: #{tpu_custom_call.1}
  #allocation0 [shape = 'u32[]', space=smem, size = 0x4, offset = 0x4, fixed_abs, tag = 'smem constant byte address 0x4 - core index']
  #allocation1 [shape = 'u32[144,128]{1,0:T(1,128)}', space=vmem, size = 0x12000, scoped, tag = 'internal scratch']
  #allocation2 [shape = 'f32[2,10]{1,0:T(2,128)}', space=vmem, size = 0x400, scoped, tag = 'scratch operand']
  %s0 = inlined_call_operand.hbm [shape: f32[2,8,256], index: 0, kind: input, shape index: {}]
  %s1 = inlined_call_operand.vmem [shape: f32[1,8,1], index: 1, kind: input, shape index: {}]
  %s2 = inlined_call_operand.vmem [shape: f32[1,8,1], index: 2, kind: input, shape index: {}]
  %s3 = inlined_call_operand.vmem [shape: f32[8,10], index: 3, kind: input, shape index: {}]
  %s4 = inlined_call_operand.vmem [shape: f32[1,10], index: 4, kind: input, shape index: {}]
  %s5 = inlined_call_operand.hbm [shape: f32[2,10], index: 5, kind: output, shape index: {}]
  %s6 = sld [smem:[#allocation0]]
  $region42: #{tpu_custom_call.1} parent=0
    _
  %s8 = ssub.s32 1, %s6
  %s9 = scalar_select 0, %s8, %s6
  $region1: #{tpu_custom_call.1} parent=0
    #allocation3 [shape = 'u8[16384]{0}', space=vmem, size = 0x4000, scoped, tag = 'input window, operand 0, single buffered']
    #allocation4 [shape = 's32[1]{0}', space=sflag, size = 0x4, scoped, tag = 'scoped memory for tpu_custom_call.1']
    #allocation5 [shape = 's32[1]{0}', space=sflag, size = 0x4, scoped, tag = 'scoped memory for tpu_custom_call.1']
    #allocation6 [shape = 'u8[1024]{0}', space=vmem, size = 0x400, scoped, tag = 'output window, operand 0, single buffered']
    %10 = vsyncpa [#allocation4], 0
    %11 = vsyncpa [#allocation5], 0
    // Predicated region
    $region2: #{tpu_custom_call.1} parent=1 // pred_check
      _
    $region3: #{tpu_custom_call.1} parent=1 // pred_check_branch
      %13 = sbr.rel (0) target = $region5
    $region4: #{tpu_custom_call.1} parent=1 // pred_region
      %s15 = ssub.s32 512, 512
      %16 = vsyncadd [#allocation4], %s15
      %s17 = sshll.u32 [#allocation3], 4
      %s18 = int_to_ptr.vmem [resolvable:$true] %s17
      %23 = dma.hbm_to_vmem [thread:$0]  %s0, 512, %s18, [#allocation4], 256, 256, 16
    $region5: #{tpu_custom_call.1} parent=1 // pred_fallthru
      _
    // Predicated region
    $region6: #{tpu_custom_call.1} parent=1 // pred_check
      _
    $region7: #{tpu_custom_call.1} parent=1 // pred_check_branch
      %25 = sbr.rel (0) target = $region9
    $region8: #{tpu_custom_call.1} parent=1 // pred_region
      _
    $region9: #{tpu_custom_call.1} parent=1 // pred_fallthru
      _
    // Predicated region
    $region10: #{tpu_custom_call.1} parent=1 // pred_check
      _
    $region11: #{tpu_custom_call.1} parent=1 // pred_check_branch
      %27 = sbr.rel (0) target = $region13
    $region12: #{tpu_custom_call.1} parent=1 // pred_region
      _
    $region13: #{tpu_custom_call.1} parent=1 // pred_fallthru
      _
    // Predicated region
    $region14: #{tpu_custom_call.1} parent=1 // pred_check
      _
    $region15: #{tpu_custom_call.1} parent=1 // pred_check_branch
      %29 = sbr.rel (0) target = $region17
    $region16: #{tpu_custom_call.1} parent=1 // pred_region
      _
    $region17: #{tpu_custom_call.1} parent=1 // pred_fallthru
      _
    // Predicated region
    $region18: #{tpu_custom_call.1} parent=1 // pred_check
      _
    $region19: #{tpu_custom_call.1} parent=1 // pred_check_branch
      %31 = sbr.rel (0) target = $region21
    $region20: #{tpu_custom_call.1} parent=1 // pred_region
      _
    $region21: #{tpu_custom_call.1} parent=1 // pred_fallthru
      _
    // Predicated region
    $region22: #{tpu_custom_call.1} parent=1 // pred_check
      _
    $region23: #{tpu_custom_call.1} parent=1 // pred_check_branch
      %33 = sbr.rel (0) target = $region25
    $region24: #{tpu_custom_call.1} parent=1 // pred_region
      %34 = dma.done [#allocation4], 512
    $region25: #{tpu_custom_call.1} parent=1 // pred_fallthru
      _
    %p35 = scmp.eq.s32.totalorder 0, 0
    // Predicated region
    $region26: #{tpu_custom_call.1} parent=1 // pred_check
      %p36 = pneg %p35
    $region27: #{tpu_custom_call.1} parent=1 // pred_check_branch
      %38 = sbr.rel (%p36) target = $region29
    $region28: #{tpu_custom_call.1} parent=1 // pred_region
      %vm39 = vcmask 74752
      %40 = vst.msk [vmem:[#allocation2] sm:$0x3] %vm39, 0.0
    $region29: #{tpu_custom_call.1} parent=1 // pred_fallthru
      _
    %v41 = vld [vmem:[#allocation3] sm:$0xff]
    %v42 = vld [vmem:[#allocation3 + $0x8] sm:$0xff]
    %v43 = vld [vmem:[#allocation3 + $0x10] sm:$0xff]
    %v44 = vld [vmem:[#allocation3 + $0x18] sm:$0xff]
    %v45 = vadd.f32 %v41, %v42
    %v46 = vadd.f32 %v45, %v43
    %v47 = vadd.f32 %v46, %v44
    %48 = vadd.xlane.f32.xlu0 %v47
    %v49 = vpop.xlane.xlu0 %48
    %v50 = vmul.f32 %v41, %v41
    %v51 = vmul.f32 %v42, %v42
    %v52 = vmul.f32 %v43, %v43
    %v53 = vmul.f32 %v44, %v44
    %v54 = vadd.f32 %v50, %v51
    %v55 = vadd.f32 %v54, %v52
    %v56 = vadd.f32 %v55, %v53
    %57 = vadd.xlane.f32.xlu0 %v56
    %v58 = vpop.xlane.xlu0 %57
    %v59 = vmul.f32 %v49, 0.001953125
    %v60 = vmul.f32 %v58, 0.001953125
    %v61 = vmul.f32 %v59, %v59
    %v62 = vsub.f32 %v60, %v61
    %v63 = vmax.f32 %v62, 0.0
    %v64 = vadd.f32 %v63, 1e-05
    %v65 = vrsqrt.pop %v64
    %v66 = vld [vmem:[%s1] sm:$0xff]
    %v67 = vmul.f32 %v66, %v65
    %v68 = vld [vmem:[%s2] sm:$0xff]
    %v69 = vmul.f32 %v59, %v67
    %v70 = vsub.f32 %v68, %v69
    %72 = vset.pattern.permute.xlu0 0
    %73 = vperm.xlu0 %72, %v67
    %v74 = vpop.permute.xlu0 %73
    %v76 = vmul.f32 %v41, %v74
    %v77 = vmul.f32 %v42, %v74
    %v78 = vmul.f32 %v43, %v74
    %v79 = vmul.f32 %v44, %v74
    %81 = vset.pattern.permute.xlu0 0
    %82 = vperm.xlu0 %81, %v70
    %v83 = vpop.permute.xlu0 %82
    %v85 = vadd.f32 %v76, %v83
    %v86 = vadd.f32 %v77, %v83
    %v87 = vadd.f32 %v78, %v83
    %v88 = vadd.f32 %v79, %v83
    %v89 = vmax.f32 %v85, 0.0
    %v90 = vmax.f32 %v86, 0.0
    %v91 = vmax.f32 %v87, 0.0
    %v92 = vmax.f32 %v88, 0.0
    %v93 = vadd.f32 %v89, %v90
    %94 = vadd.xlane.f32.xlu0 %v93
    %v95 = vpop.xlane.xlu0 %94
    %v96 = vadd.f32 %v91, %v92
    %97 = vadd.xlane.f32.xlu0 %v96
    %v98 = vpop.xlane.xlu0 %97
    %v99 = vmul.f32 %v95, 0.00390625
    %v100 = vmul.f32 %v98, 0.00390625
    %v101 = vld [vmem:[#allocation2] sm:$0x3]
    %v102 = vld [vmem:[%s3] sm:$0xff]
    %v105 = vlaneseq
    %v106 = vand.u32 %v105, 127
    %v107 = vlaneseq
    %v108 = vshrl.u32 %v107, 7
    %v109 = vsub.s32 %v106, %v108
    %v110 = vrot.slane %v99, %v109
    %v111 = vlaneseq
    %v112 = vshrl.u32 %v111, 7
    %v113 = vsub.s32 %v106, %v112
    %v114 = vrot.slane %v100, %v113
    %vm115 = vcmask 1041409
    %v116 = vsel %vm115, %v114, %v110
    %vm117 = vcmask 64512
    %v118 = vsel %vm117, %v116, 0
    %120 = vmatprep.subr.mxu0 0.0
    %121 = vmatpush1.msra.mxu0 %v102
    %122 = vmatprep.subr.mxu0 0.0
    %123 = vmatpush1.msra.mxu0 0.0
    %124 = vmatprep.subr.mxu0 0.0
    %125 = vmatpush1.msra.mxu0 0.0
    %126 = vmatprep.subr.mxu0 0.0
    %127 = vmatpush1.msra.mxu0 0.0
    %128 = vmatprep.subr.mxu0 0.0
    %129 = vmatpush1.msra.mxu0 0.0
    %130 = vmatprep.subr.mxu0 0.0
    %131 = vmatpush1.msra.mxu0 0.0
    %132 = vmatprep.subr.mxu0 0.0
    %133 = vmatpush1.msra.mxu0 0.0
    %134 = vmatprep.subr.mxu0 0.0
    %135 = vmatpush1.msra.mxu0 0.0
    %136 = vmatprep.subr.mxu0 0.0
    %137 = vmatpush1.msra.mxu0 0.0
    %138 = vmatprep.subr.mxu0 0.0
    %139 = vmatpush1.msra.mxu0 0.0
    %140 = vmatprep.subr.mxu0 0.0
    %141 = vmatpush1.msra.mxu0 0.0
    %142 = vmatprep.subr.mxu0 0.0
    %143 = vmatpush1.msra.mxu0 0.0
    %144 = vmatprep.subr.mxu0 0.0
    %145 = vmatpush1.msra.mxu0 0.0
    %146 = vmatprep.subr.mxu0 0.0
    %147 = vmatpush1.msra.mxu0 0.0
    %148 = vmatprep.subr.mxu0 0.0
    %149 = vmatpush1.msra.mxu0 0.0
    %150 = vmatprep.subr.mxu0 0.0
    %151 = vmatpush1.msra.mxu0 0.0
    %152 = vmatprep.subr.mxu0 0.0
    %153 = vmatpush1.msra.mxu0 0.0
    %154 = vmatprep.subr.mxu0 0.0
    %155 = vmatpush1.msra.mxu0 0.0
    %156 = vmatprep.subr.mxu0 0.0
    %157 = vmatpush1.msra.mxu0 0.0
    %158 = vmatprep.subr.mxu0 0.0
    %159 = vmatpush1.msra.mxu0 0.0
    %160 = vmatprep.subr.mxu0 0.0
    %161 = vmatpush1.msra.mxu0 0.0
    %162 = vmatprep.subr.mxu0 0.0
    %163 = vmatpush1.msra.mxu0 0.0
    %164 = vmatprep.subr.mxu0 0.0
    %165 = vmatpush1.msra.mxu0 0.0
    %166 = vmatprep.subr.mxu0 0.0
    %167 = vmatpush1.msra.mxu0 0.0
    %168 = vmatprep.subr.mxu0 0.0
    %169 = vmatpush1.msra.mxu0 0.0
    %170 = vmatprep.subr.mxu0 0.0
    %171 = vmatpush1.msra.mxu0 0.0
    %172 = vmatprep.subr.mxu0 0.0
    %173 = vmatpush1.msra.mxu0 0.0
    %174 = vmatprep.subr.mxu0 0.0
    %175 = vmatpush1.msra.mxu0 0.0
    %176 = vmatprep.subr.mxu0 0.0
    %177 = vmatpush1.msra.mxu0 0.0
    %178 = vmatprep.subr.mxu0 0.0
    %179 = vmatpush1.msra.mxu0 0.0
    %180 = vmatprep.subr.mxu0 0.0
    %181 = vmatpush1.msra.mxu0 0.0
    %182 = vmatprep.subr.mxu0 0.0
    %183 = vmatpush1.msra.mxu0 0.0
    %184 = vmatprep.mubr.f32.mxu0 0.0
    %185 = vmatmul.mubr.f32.gmra.mrb[0].mxu0 %v118
    %v186 = vpop.f32.mrb[0].mxu0
    %v187 = vadd.f32 0.0, %v186
    %v188 = vpop.f32.mrb[0].mxu0
    %189 = vdwg.mxu0
    %v190 = vadd.f32 %v101, %v187
    %vm191 = vcmask 74752
    %192 = vst.msk [vmem:[#allocation2] sm:$0x3] %vm191, %v190
    // Predicated region
    $region30: #{tpu_custom_call.1} parent=1 // pred_check
      %p193 = pneg %p35
    $region31: #{tpu_custom_call.1} parent=1 // pred_check_branch
      %195 = sbr.rel (%p193) target = $region33
    $region32: #{tpu_custom_call.1} parent=1 // pred_region
      %v196 = vld [vmem:[#allocation2] sm:$0x3]
      %v197 = vld [vmem:[%s4] sm:$0x1]
      %v199 = vlaneseq
      %v200 = vshrl.u32 %v199, 7
      %v201 = vsub.s32 0, %v200
      %v202 = vrot.slane %v197, %v201
      %v204 = vadd.f32 %v196, %v202
      %205 = vst.msk [vmem:[#allocation6] sm:$0x3] %vm191, %v204
    $region33: #{tpu_custom_call.1} parent=1 // pred_fallthru
      _
    // Predicated region
    $region34: #{tpu_custom_call.1} parent=1 // pred_check
      _
    $region35: #{tpu_custom_call.1} parent=1 // pred_check_branch
      %207 = sbr.rel (0) target = $region37
    $region36: #{tpu_custom_call.1} parent=1 // pred_region
      %s209 = ssub.s32 32, 32
      %210 = vsyncadd [#allocation5], %s209
      %s212 = sshll.u32 [#allocation6], 4
      %s213 = int_to_ptr.vmem [resolvable:$true] %s212
      %215 = dma.vmem_to_hbm [thread:$0]  %s213, 32, %s5, [#allocation5]
    $region37: #{tpu_custom_call.1} parent=1 // pred_fallthru
      _
    // Predicated region
    $region38: #{tpu_custom_call.1} parent=1 // pred_check
      _
    $region39: #{tpu_custom_call.1} parent=1 // pred_check_branch
      %217 = sbr.rel (0) target = $region41
    $region40: #{tpu_custom_call.1} parent=1 // pred_region
      %218 = dma.done [#allocation5], 32
    $region41: #{tpu_custom_call.1} parent=1 // pred_fallthru
      _
    %219 = vsyncpa [#allocation4], 1
    %220 = vsyncpa [#allocation5], 1

</llo_original>
